<compile_context>
chip_gen: v6e
topology: v6e:2x2x1
jax: 0.10.0
libtpu: 0.0.40
codegen_flags: <defaults>
</compile_context>

<pallas_src>
import functools

import jax
import jax.numpy as jnp
from jax.experimental import pallas as pl
from jax.experimental.pallas import tpu as pltpu

LANE = 128        # vreg lane width
ROW_ALIGN = 16    # row granularity inside the slab (safe for f32 and packed bf16)
BIAS_ROWS = 16    # one shared block holding b1/b2/b3 in rows 0/1/2


def _round_up(x, m):
    return (x + m - 1) // m * m


def _cdiv(a, b):
    return -(-a // b)


# ---------------------------------------------------------------------------
# Kernel
# ---------------------------------------------------------------------------
def _mlp_kernel(x_ref, slab_ref, o_ref, *, r1, r2, r3):
    """x_ref: (TB, r1); slab_ref: (r1+r2+r3+BIAS_ROWS, L); o_ref: (TB, L)."""
    w1_off = 0
    w2_off = r1
    w3_off = r1 + r2
    b_off = r1 + r2 + r3

    wd = slab_ref.dtype

    # Weights (tight contraction rows) + all biases in one block.
    w1 = slab_ref[pl.ds(w1_off, r1), :]
    w2 = slab_ref[pl.ds(w2_off, r2), :]
    w3 = slab_ref[pl.ds(w3_off, r3), :]
    bias_blk = slab_ref[pl.ds(b_off, BIAS_ROWS), :].astype(jnp.float32)
    b1 = bias_blk[0:1, :]
    b2 = bias_blk[1:2, :]
    b3 = bias_blk[2:3, :]

    x = x_ref[...].astype(wd)

    # Layer 1: (TB, r1) @ (r1, L), f32 accumulate, f32 bias add, ReLU.
    h1 = jnp.dot(x, w1, preferred_element_type=jnp.float32) + b1
    h1 = jnp.maximum(h1, 0.0)

    # Layer 2: contract over the first r2 lanes (the rest are exact zeros).
    h2 = jnp.dot(h1[:, :r2].astype(wd), w2, preferred_element_type=jnp.float32) + b2
    h2 = jnp.maximum(h2, 0.0)

    # Layer 3 (no activation).
    out = jnp.dot(h2[:, :r3].astype(wd), w3, preferred_element_type=jnp.float32) + b3

    o_ref[...] = out.astype(o_ref.dtype)


# ---------------------------------------------------------------------------
# Parameter packing (host-side, once)
# ---------------------------------------------------------------------------
def pack_params(params, dtype=jnp.bfloat16):
    """Pack (w1,b1,w2,b2,w3,b3) into one tight lane-dense slab.

    Weights are stored [fan_in, fan_out] (pre-transposed vs. PyTorch's [out, in]).
    Each weight keeps only round_up(fan_in, ROW_ALIGN) rows; output dims share a
    common lane width L = round_up(max(fan_out), 128).  Biases live in rows
    0/1/2 of a single BIAS_ROWS block at the end.

    Returns (slab[(r1+r2+r3+BIAS_ROWS), L], (r1, r2, r3)).
    """
    w1, b1 = params["w1"], params["b1"]
    w2, b2 = params["w2"], params["b2"]
    w3, b3 = params["w3"], params["b3"]

    in_size, h1_size = w1.shape
    h2_size = w2.shape[1]
    out_size = w3.shape[1]

    L = _round_up(max(h1_size, h2_size, out_size), LANE)
    r1 = _round_up(in_size, ROW_ALIGN)
    r2 = _round_up(h1_size, ROW_ALIGN)
    r3 = _round_up(h2_size, ROW_ALIGN)
    rows = r1 + r2 + r3 + BIAS_ROWS

    slab = jnp.zeros((rows, L), dtype)
    slab = slab.at[:in_size, :h1_size].set(w1.astype(dtype))
    slab = slab.at[r1:r1 + h1_size, :h2_size].set(w2.astype(dtype))
    slab = slab.at[r1 + r2:r1 + r2 + h2_size, :out_size].set(w3.astype(dtype))
    boff = r1 + r2 + r3
    slab = slab.at[boff, :h1_size].set(b1.reshape(-1).astype(dtype))
    slab = slab.at[boff + 1, :h2_size].set(b2.reshape(-1).astype(dtype))
    slab = slab.at[boff + 2, :out_size].set(b3.reshape(-1).astype(dtype))
    return slab, (r1, r2, r3)


# ---------------------------------------------------------------------------
# Wrapper
# ---------------------------------------------------------------------------
def _choose_batch_tile(B):
    """Big tiles amortize per-grid-step overhead; keep 2 balanced steps for v7x."""
    TB_CAP = 512
    b = _round_up(B, ROW_ALIGN)
    if b <= ROW_ALIGN:
        tb = b                                   # tiny batch: single step
    elif b <= 2 * TB_CAP:
        tb = _round_up(_cdiv(b, 2), ROW_ALIGN)   # 2 balanced steps (megacore)
    else:
        tb = TB_CAP                              # large batch: 512-row tiles
    return tb, _round_up(b, tb)


def _slab_spec(rows, L):
    # Constant index_map -> slab stays VMEM-resident across the grid; Buffered(1)
    # skips the pointless second double-buffer copy.
    try:
        return pl.BlockSpec((rows, L), lambda i: (0, 0),
                            pipeline_mode=pl.Buffered(1))
    except TypeError:  # older JAX without pipeline_mode
        return pl.BlockSpec((rows, L), lambda i: (0, 0))


@functools.partial(jax.jit, static_argnames=("dims", "out_size"))
def linear_qnet_forward(x, slab, *, dims, out_size):
    """x: [B, input_size] float32; slab/dims: from pack_params."""
    r1, r2, r3 = dims
    B, in_size = x.shape
    rows, L = slab.shape

    TB, B_pad = _choose_batch_tile(B)

    # Cast x to the slab dtype (bf16 halves the x-tile DMA); pad only the batch
    # rows and the feature dim up to r1 (16), not to 128 lanes.
    x_p = x.astype(slab.dtype)
    if B_pad != B or r1 != in_size:
        x_p = jnp.pad(x_p, ((0, B_pad - B), (0, r1 - in_size)))

    out_p = pl.pallas_call(
        functools.partial(_mlp_kernel, r1=r1, r2=r2, r3=r3),
        out_shape=jax.ShapeDtypeStruct((B_pad, L), jnp.float32),
        grid=(B_pad // TB,),
        in_specs=[
            pl.BlockSpec((TB, r1), lambda i: (i, 0)),   # x tile, pipelined over batch
            _slab_spec(rows, L),                        # params, VMEM-resident
        ],
        out_specs=pl.BlockSpec((TB, L), lambda i: (i, 0)),  # lane-dense stores
        compiler_params=pltpu.CompilerParams(
            dimension_semantics=("parallel",),          # megacore-shardable grid
        ),
    )(x_p, slab)

    # Small unavoidable XLA slice back to the logical shape.
    return out_p[:B, :out_size]


def init_params(key, input_size, hidden_1, hidden_2, output_size):
    """nn.Linear-style uniform(-1/sqrt(fan_in), 1/sqrt(fan_in)) init."""
    keys = jax.random.split(key, 6)

    def linear(kw, kb, fan_in, fan_out):
        bound = 1.0 / jnp.sqrt(float(fan_in))
        w = jax.random.uniform(kw, (fan_in, fan_out), jnp.float32, -bound, bound)
        b = jax.random.uniform(kb, (1, fan_out), jnp.float32, -bound, bound)
        return w, b

    w1, b1 = linear(keys[0], keys[1], input_size, hidden_1)
    w2, b2 = linear(keys[2], keys[3], hidden_1, hidden_2)
    w3, b3 = linear(keys[4], keys[5], hidden_2, output_size)
    return {"w1": w1, "b1": b1, "w2": w2, "b2": b2, "w3": w3, "b3": b3}


if __name__ == "__main__":
    # Q-network shapes; batch=200 exercises batch padding and a 2-step grid.
    input_size, hidden_1, hidden_2, output_size = 16, 32, 32, 8
    batch = 200

    key = jax.random.PRNGKey(0)
    kx, kp = jax.random.split(key)
    x = jax.random.normal(kx, (batch, input_size), jnp.float32)
    params = init_params(kp, input_size, hidden_1, hidden_2, output_size)

    # Pack once outside the hot path.  bf16 slab: half the parameter/x DMA bytes and
    # MXU-native on all generations; accumulation stays f32 in-kernel.
    slab, dims = pack_params(params, dtype=jnp.bfloat16)

    out = linear_qnet_forward(x, slab, dims=dims, out_size=output_size)
    out = jax.block_until_ready(out)

    # Pure-JAX f32 reference (unpadded math, PyTorch semantics).
    def ref(x, p):
        h1 = jnp.maximum(x @ p["w1"] + p["b1"], 0.0)
        h2 = jnp.maximum(h1 @ p["w2"] + p["b2"], 0.0)
        return h2 @ p["w3"] + p["b3"]

    expected = ref(x, params)
    assert out.shape == (batch, output_size)
    # bf16 weight/activation storage vs. f32 reference -> loosened tolerance.
    max_err = float(jnp.max(jnp.abs(out - expected)))
    assert jnp.allclose(out, expected, atol=5e-2, rtol=5e-2), max_err

    # TODO(synk): LinearQNet.save() (torch.save checkpoint I/O) is host-side and has
    # no kernel equivalent; omitted.

    print("KERNEL_OK")
</pallas_src>

<mosaic_0001>
module attributes {stable_mosaic.version = 11 : i64} {
  func.func @_mlp_kernel(%arg0: i32, %arg1: memref<112x16xbf16, #tpu.memory_space<vmem>>, %arg2: memref<96x128xbf16, #tpu.memory_space<vmem>>, %arg3: memref<112x128xf32, #tpu.memory_space<vmem>>) attributes {dimension_semantics = [#tpu.dimension_semantics<parallel>], iteration_bounds = array<i64: 2>, scalar_prefetch = 0 : i64, scratch_operands = 0 : i64, tpu.core_type = #tpu.core_type<tc>, window_params = [{transform_indices = @transform_0, window_bounds = array<i64: 112, 16>}, {pipeline_mode = #tpu.pipeline_mode<synchronous>, transform_indices = @transform_1, window_bounds = array<i64: 96, 128>}, {transform_indices = @transform_2, window_bounds = array<i64: 112, 128>}]} {
    %c0 = arith.constant 0 : index
    %c0_0 = arith.constant 0 : index
    %0 = vector.load %arg2[%c0, %c0_0] : memref<96x128xbf16, #tpu.memory_space<vmem>>, vector<16x128xbf16>
    %c16 = arith.constant 16 : index
    %c0_1 = arith.constant 0 : index
    %1 = vector.load %arg2[%c16, %c0_1] : memref<96x128xbf16, #tpu.memory_space<vmem>>, vector<32x128xbf16>
    %c48 = arith.constant 48 : index
    %c0_2 = arith.constant 0 : index
    %2 = vector.load %arg2[%c48, %c0_2] : memref<96x128xbf16, #tpu.memory_space<vmem>>, vector<32x128xbf16>
    %c80 = arith.constant 80 : index
    %c0_3 = arith.constant 0 : index
    %3 = vector.load %arg2[%c80, %c0_3] : memref<96x128xbf16, #tpu.memory_space<vmem>>, vector<16x128xbf16>
    %4 = arith.extf %3 : vector<16x128xbf16> to vector<16x128xf32>
    %5 = vector.extract_strided_slice %4 {offsets = [0, 0], sizes = [1, 128], strides = [1, 1]} : vector<16x128xf32> to vector<1x128xf32>
    %6 = vector.extract_strided_slice %4 {offsets = [1, 0], sizes = [1, 128], strides = [1, 1]} : vector<16x128xf32> to vector<1x128xf32>
    %7 = vector.extract_strided_slice %4 {offsets = [2, 0], sizes = [1, 128], strides = [1, 1]} : vector<16x128xf32> to vector<1x128xf32>
    %c0_4 = arith.constant 0 : index
    %c0_5 = arith.constant 0 : index
    %8 = vector.load %arg1[%c0_4, %c0_5] : memref<112x16xbf16, #tpu.memory_space<vmem>>, vector<112x16xbf16>
    %cst = arith.constant dense<0.000000e+00> : vector<112x128xf32>
    %9 = tpu.matmul %8, %0, %cst {dimension_numbers = #tpu.dot_dimension_numbers<[1], [0], [0], [1], [0, 0, 1, 1], [], []>} : vector<112x16xbf16>, vector<16x128xbf16>, vector<112x128xf32> -> vector<112x128xf32>
    %10 = vector.broadcast %5 : vector<1x128xf32> to vector<112x128xf32>
    %11 = arith.addf %9, %10 : vector<112x128xf32>
    %cst_6 = arith.constant 0.000000e+00 : f32
    %12 = vector.broadcast %cst_6 : f32 to vector<112x128xf32>
    %13 = arith.maximumf %11, %12 : vector<112x128xf32>
    %14 = vector.extract_strided_slice %13 {offsets = [0, 0], sizes = [112, 32], strides = [1, 1]} : vector<112x128xf32> to vector<112x32xf32>
    %15 = arith.truncf %14 : vector<112x32xf32> to vector<112x32xbf16>
    %cst_7 = arith.constant dense<0.000000e+00> : vector<112x128xf32>
    %16 = tpu.matmul %15, %1, %cst_7 {dimension_numbers = #tpu.dot_dimension_numbers<[1], [0], [0], [1], [0, 0, 1, 1], [], []>} : vector<112x32xbf16>, vector<32x128xbf16>, vector<112x128xf32> -> vector<112x128xf32>
    %17 = vector.broadcast %6 : vector<1x128xf32> to vector<112x128xf32>
    %18 = arith.addf %16, %17 : vector<112x128xf32>
    %cst_8 = arith.constant 0.000000e+00 : f32
    %19 = vector.broadcast %cst_8 : f32 to vector<112x128xf32>
    %20 = arith.maximumf %18, %19 : vector<112x128xf32>
    %21 = vector.extract_strided_slice %20 {offsets = [0, 0], sizes = [112, 32], strides = [1, 1]} : vector<112x128xf32> to vector<112x32xf32>
    %22 = arith.truncf %21 : vector<112x32xf32> to vector<112x32xbf16>
    %cst_9 = arith.constant dense<0.000000e+00> : vector<112x128xf32>
    %23 = tpu.matmul %22, %2, %cst_9 {dimension_numbers = #tpu.dot_dimension_numbers<[1], [0], [0], [1], [0, 0, 1, 1], [], []>} : vector<112x32xbf16>, vector<32x128xbf16>, vector<112x128xf32> -> vector<112x128xf32>
    %24 = vector.broadcast %7 : vector<1x128xf32> to vector<112x128xf32>
    %25 = arith.addf %23, %24 : vector<112x128xf32>
    %c0_10 = arith.constant 0 : index
    %c0_11 = arith.constant 0 : index
    %26 = vector.load %arg3[%c0_10, %c0_11] : memref<112x128xf32, #tpu.memory_space<vmem>>, vector<112x128xf32>
    tpu.vector_store %arg3[%c0_10, %c0_11], %25 {strides = array<i32>} : memref<112x128xf32, #tpu.memory_space<vmem>>, vector<112x128xf32>,
    return
  }
  func.func @transform_0(%arg0: i32) -> (i32, i32) {
    %c0_i32 = arith.constant 0 : i32
    %c0_i32_0 = arith.constant 0 : i32
    return %arg0, %c0_i32 : i32, i32
  }
  func.func @transform_1(%arg0: i32) -> (i32, i32) {
    %c0_i32 = arith.constant 0 : i32
    %c0_i32_0 = arith.constant 0 : i32
    %c0_i32_1 = arith.constant 0 : i32
    return %c0_i32, %c0_i32_0 : i32, i32
  }
  func.func @transform_2(%arg0: i32) -> (i32, i32) {
    %c0_i32 = arith.constant 0 : i32
    %c0_i32_0 = arith.constant 0 : i32
    return %arg0, %c0_i32 : i32, i32
  }
}

</mosaic_0001>

<llo_original>
// kernel: linear_qnet_forward.1
$region0: #{linear_qnet_forward.1}
  #allocation0 [shape = 'u32[]', space=smem, size = 0x4, offset = 0x4, fixed_abs, tag = 'smem constant byte address 0x4 - core index']
  #allocation1 [shape = 'u32[144,128]{1,0:T(1,128)}', space=vmem, size = 0x12000, scoped, tag = 'internal scratch']
  %s0 = inlined_call_operand.vmem [shape: bf16[224,16], index: 0, kind: input, shape index: {}]
  %s1 = inlined_call_operand.vmem [shape: bf16[96,128], index: 1, kind: input, shape index: {}]
  %s2 = inlined_call_operand.vmem [shape: f32[224,128], index: 2, kind: output, shape index: {}]
  %s3 = sld [smem:[#allocation0]]
  $region41: #{linear_qnet_forward.1} parent=0
    _
  %s5 = ssub.s32 1, %s3
  %s6 = scalar_select 0, %s5, %s3
  loop: start=0, step=1, limit=4
  $region2: #{linear_qnet_forward.1} parent=0 // loop_pre_header
    _
  $region3: #{linear_qnet_forward.1} parent=0 // loop_header
    %s8 = sphi 0, %s12
    %p9 = scmp.ge.s32.totalorder %s8, 4
    %s18 = sphi 0, %s20
    %s21 = sphi 0, %s18
    %s22 = sphi 0, %s21
    %s38 = sphi 0, %s22
    %s42 = sphi 0, %s42
    %s44 = sphi 0, %s42
    %s45 = sphi 0, %s44
    %s59 = sphi 0, %s45
    %s65 = sphi 0, %s67
    %s68 = sphi 0, %s65
    %s69 = sphi 0, %s68
    %s85 = sphi 0, %s69
  $region4: #{linear_qnet_forward.1} parent=0 // loop_header_branch
    %11 = sbr.rel (%p9) target = $region8
  $region5: #{linear_qnet_forward.1} parent=0 // loop_body
    %s13 = ssub.s32 %s8, 1
    %s14 = ssub.s32 %s8, 2
    %s15 = sadd.s32 %s8, 1
    %s16 = ssub.s32 %s8, %s15
    %p17 = scmp.eq.s32.totalorder %s16, 0
    %s19 = sadd.s32 %s18, 1
    %s20 = scalar_select %p17, %s18, %s19
    %p23 = pneg %p17
    %p24 = scmp.eq.s32.totalorder %s8, 1
    %p25 = por %p23, %p24
    %p26 = scmp.ne.s32.totalorder %s18, %s21
    %p27 = scmp.eq.s32.totalorder %s8, 0
    %p28 = por %p26, %p27
    %p29 = scmp.ne.s32.totalorder %s18, %s21
    %p30 = scmp.eq.s32.totalorder %s13, 1
    %p31 = por %p29, %p30
    %p32 = scmp.ne.s32.totalorder %s21, %s22
    %p33 = scmp.eq.s32.totalorder %s13, 0
    %p34 = por %p32, %p33
    %p35 = scmp.ne.s32.totalorder %s21, %s22
    %p36 = scmp.eq.s32.totalorder %s14, 1
    %p37 = por %p35, %p36
    %p39 = scmp.ne.s32.totalorder %s22, %s38
    %p40 = scmp.eq.s32.totalorder %s14, 0
    %p41 = por %p39, %p40
    %s43 = sadd.s32 %s42, 1
    %p46 = scmp.eq.s32.totalorder %s8, 1
    %p47 = scmp.ne.s32.totalorder %s42, %s44
    %p48 = scmp.eq.s32.totalorder %s8, 0
    %p49 = por %p47, %p48
    %p50 = scmp.ne.s32.totalorder %s42, %s44
    %p51 = scmp.eq.s32.totalorder %s13, 1
    %p52 = por %p50, %p51
    %p53 = scmp.ne.s32.totalorder %s44, %s45
    %p54 = scmp.eq.s32.totalorder %s13, 0
    %p55 = por %p53, %p54
    %p56 = scmp.ne.s32.totalorder %s44, %s45
    %p57 = scmp.eq.s32.totalorder %s14, 1
    %p58 = por %p56, %p57
    %p60 = scmp.ne.s32.totalorder %s45, %s59
    %p61 = scmp.eq.s32.totalorder %s14, 0
    %p62 = por %p60, %p61
    %s63 = ssub.s32 %s8, %s15
    %p64 = scmp.eq.s32.totalorder %s63, 0
    %s66 = sadd.s32 %s65, 1
    %s67 = scalar_select %p64, %s65, %s66
    %p70 = pneg %p64
    %p71 = scmp.eq.s32.totalorder %s8, 1
    %p72 = por %p70, %p71
    %p73 = scmp.ne.s32.totalorder %s65, %s68
    %p74 = scmp.eq.s32.totalorder %s8, 0
    %p75 = por %p73, %p74
    %p76 = scmp.ne.s32.totalorder %s65, %s68
    %p77 = scmp.eq.s32.totalorder %s13, 1
    %p78 = por %p76, %p77
    %p79 = scmp.ne.s32.totalorder %s68, %s69
    %p80 = scmp.eq.s32.totalorder %s13, 0
    %p81 = por %p79, %p80
    %p82 = scmp.ne.s32.totalorder %s68, %s69
    %p83 = scmp.eq.s32.totalorder %s14, 1
    %p84 = por %p82, %p83
    %p86 = scmp.ne.s32.totalorder %s69, %s85
    %p87 = scmp.eq.s32.totalorder %s14, 0
    %p88 = por %p86, %p87
    %p89 = scmp.le.s32.totalorder 1, %s8
    %p90 = scmp.lt.s32.totalorder %s8, 3
    %p91 = pnand %p89, %p90
    %p92 = pneg %p91
    // Predicated region
    $region9: #{linear_qnet_forward.1} parent=5 // pred_check
      _
    $region10: #{linear_qnet_forward.1} parent=5 // pred_check_branch
      %94 = sbr.rel (%p91) target = $region12
    $region11: #{linear_qnet_forward.1} parent=5 // pred_region
      %s95 = ssub.s32 %s8, 1
      // Predicated region
      $region13: #{linear_qnet_forward.1} parent=11 // pred_check
        %p96 = pneg %p55
      $region14: #{linear_qnet_forward.1} parent=11 // pred_check_branch
        %98 = sbr.rel (%p96) target = $region16
      $region15: #{linear_qnet_forward.1} parent=11 // pred_region
        _
      $region16: #{linear_qnet_forward.1} parent=11 // pred_fallthru
        _
    $region12: #{linear_qnet_forward.1} parent=5 // pred_fallthru
      _
    %p99 = scmp.lt.s32.totalorder %s8, 2
    // Predicated region
    $region17: #{linear_qnet_forward.1} parent=5 // pred_check
      %p100 = pneg %p99
    $region18: #{linear_qnet_forward.1} parent=5 // pred_check_branch
      %102 = sbr.rel (%p100) target = $region20
    $region19: #{linear_qnet_forward.1} parent=5 // pred_region
      // Predicated region
      $region21: #{linear_qnet_forward.1} parent=19 // pred_check
        %p103 = pneg %p28
      $region22: #{linear_qnet_forward.1} parent=19 // pred_check_branch
        %105 = sbr.rel (%p103) target = $region24
      $region23: #{linear_qnet_forward.1} parent=19 // pred_region
        %s106 = smul.u32 14, %s8
        %p107 = scmp.lt.s32.totalorder %s106, 27
        %s108 = scalar_select %p107, %s106, 27
        %s109 = smul.addr %s108, 4
        %s110 = scalar_lea.vmem %s0, %s109
        %s111 = smul.u32 14, %s8
      $region24: #{linear_qnet_forward.1} parent=19 // pred_fallthru
        _
    $region20: #{linear_qnet_forward.1} parent=5 // pred_fallthru
      _
    %p112 = scmp.le.s32.totalorder 1, %s8
    %p113 = scmp.lt.s32.totalorder %s8, 3
    %p114 = pnand %p112, %p113
    %p115 = pneg %p114
    // Predicated region
    $region25: #{linear_qnet_forward.1} parent=5 // pred_check
      _
    $region26: #{linear_qnet_forward.1} parent=5 // pred_check_branch
      %117 = sbr.rel (%p114) target = $region28
    $region27: #{linear_qnet_forward.1} parent=5 // pred_region
      %s118 = ssub.s32 %s8, 1
      %s119 = smul.u32 14, %s13
      %p120 = scmp.lt.s32.totalorder %s119, 27
      %s121 = scalar_select %p120, %s119, 27
      %s122 = smul.addr %s121, 4
      %s123 = scalar_lea.vmem %s0, %s122
      %p124 = pneg %p34
      %p125 = pneg %p31
      %p126 = pneg %p55
      %p127 = pneg %p52
      %p128 = pneg %p81
      %p129 = pneg %p78
      %s130 = smul.u32 14, %s13
      %p131 = scmp.lt.s32.totalorder %s130, 27
      %s132 = scalar_select %p131, %s130, 27
      %s133 = smul.addr %s132, 8
      %s134 = scalar_lea.vmem %s2, %s133
      %s135 = smul.u32 14, %s13
      %p136 = scmp.lt.s32.totalorder %s135, 27
      %s137 = scalar_select %p136, %s135, 27
      %s138 = smul.addr %s137, 4
      %s139 = scalar_lea.vmem %s0, %s138
      %s140 = smul.u32 14, %s13
      %s141 = smul.u32 14, %s13
      %p142 = scmp.lt.s32.totalorder %s141, 27
      %s143 = scalar_select %p142, %s141, 27
      %s144 = smul.addr %s143, 8
      %s145 = scalar_lea.vmem %s2, %s144
      %s146 = smul.u32 14, %s13
      %v148 = vld [vmem:[%s1] sm:$0xf]
      %v149 = vld [vmem:[%s1 + $0x4] sm:$0xf]
      %v150 = vld [vmem:[%s1 + $0x8] sm:$0xf]
      %v151 = vld [vmem:[%s1 + $0xc] sm:$0xf]
      %v152 = vld [vmem:[%s1 + $0x10] sm:$0xf]
      %v153 = vld [vmem:[%s1 + $0x14] sm:$0xf]
      %v154 = vld [vmem:[%s1 + $0x18] sm:$0xf]
      %v155 = vld [vmem:[%s1 + $0x1c] sm:$0xf]
      %v156 = vld [vmem:[%s1 + $0x20] sm:$0xf]
      %v157 = vld [vmem:[%s1 + $0x24] sm:$0xf]
      %v158 = vld [vmem:[%s1 + $0x28] sm:$0xf]
      %v159 = vunpack.c.l.bf16 %v158
      %v160 = vld [vmem:[%s139] sm:$0xf]
      %v161 = vld [vmem:[%s139 + $0x4] sm:$0xf]
      %v162 = vld [vmem:[%s139 + $0x8] sm:$0xf]
      %v163 = vld [vmem:[%s139 + $0xc] sm:$0xf]
      %v164 = vld [vmem:[%s139 + $0x10] sm:$0xf]
      %v165 = vld [vmem:[%s139 + $0x14] sm:$0xf]
      %v166 = vld [vmem:[%s139 + $0x18] sm:$0xf]
      %v167 = vld [vmem:[%s139 + $0x1c] sm:$0xf]
      %v168 = vld [vmem:[%s139 + $0x20] sm:$0xf]
      %v169 = vld [vmem:[%s139 + $0x24] sm:$0xf]
      %v170 = vld [vmem:[%s139 + $0x28] sm:$0xf]
      %v171 = vld [vmem:[%s139 + $0x2c] sm:$0xf]
      %v172 = vld [vmem:[%s139 + $0x30] sm:$0xf]
      %v173 = vld [vmem:[%s139 + $0x34] sm:$0xf]
      %v174 = vlaneseq
      %v175 = vshrl.u32 %v174, 7
      %v176 = vsub.s32 0, %v175
      %v177 = vrot.slane %v159, %v176
      %v192 = vunpack.c.l.b16 %v160
      %v193 = vunpack.c.l.b16 %v161
      %v194 = vunpack.c.l.b16 %v162
      %v195 = vunpack.c.l.b16 %v163
      %v196 = vunpack.c.l.b16 %v164
      %v197 = vunpack.c.l.b16 %v165
      %v198 = vunpack.c.l.b16 %v166
      %v199 = vunpack.c.l.b16 %v167
      %v200 = vunpack.c.l.b16 %v168
      %v201 = vunpack.c.l.b16 %v169
      %v202 = vunpack.c.l.b16 %v170
      %v203 = vunpack.c.l.b16 %v171
      %v204 = vunpack.c.l.b16 %v172
      %v205 = vunpack.c.l.b16 %v173
      %v206 = vpack.c.b16 %v193, %v192
      %v207 = vpack.c.b16 %v195, %v194
      %v208 = vpack.c.b16 %v197, %v196
      %v209 = vpack.c.b16 %v199, %v198
      %v210 = vpack.c.b16 %v201, %v200
      %v211 = vpack.c.b16 %v203, %v202
      %v212 = vpack.c.b16 %v205, %v204
      %v215 = vunpack.c.l.b16 %v148
      %v216 = vunpack.c.l.b16 %v149
      %v217 = vpack.c.b16 %v216, %v215
      %vm219 = vcmask 130048
      %v221 = vsel %vm219, %v206, 0
      %v224 = vsel %vm219, %v207, 0
      %v227 = vsel %vm219, %v208, 0
      %v230 = vsel %vm219, %v209, 0
      %v233 = vsel %vm219, %v210, 0
      %v236 = vsel %vm219, %v211, 0
      %v239 = vsel %vm219, %v212, 0
      %241 = vmatprep.subr.bf16.mxu0 0
      %242 = vmatpush1.bf16.msra.mxu0 0
      %243 = vmatprep.subr.bf16.mxu0 0
      %244 = vmatpush1.bf16.msra.mxu0 0
      %245 = vmatprep.subr.bf16.mxu0 0
      %246 = vmatpush1.bf16.msra.mxu0 0
      %247 = vmatprep.subr.bf16.mxu0 0
      %248 = vmatpush1.bf16.msra.mxu0 0
      %249 = vmatprep.subr.bf16.mxu0 0
      %250 = vmatpush1.bf16.msra.mxu0 0
      %251 = vmatprep.subr.bf16.mxu0 0
      %252 = vmatpush1.bf16.msra.mxu0 0
      %253 = vmatprep.subr.bf16.mxu0 0
      %254 = vmatpush1.bf16.msra.mxu0 0
      %255 = vmatprep.subr.bf16.mxu0 0
      %256 = vmatpush1.bf16.msra.mxu0 %v217
      %257 = vmatprep.subr.bf16.mxu0 0
      %258 = vmatpush2.bf16.msra.mxu0 0
      %259 = vmatprep.subr.bf16.mxu0 0
      %260 = vmatpush2.bf16.msra.mxu0 0
      %261 = vmatprep.subr.bf16.mxu0 0
      %262 = vmatpush2.bf16.msra.mxu0 0
      %263 = vmatprep.subr.bf16.mxu0 0
      %264 = vmatpush2.bf16.msra.mxu0 0
      %265 = vmatprep.subr.bf16.mxu0 0
      %266 = vmatpush2.bf16.msra.mxu0 0
      %267 = vmatprep.subr.bf16.mxu0 0
      %268 = vmatpush2.bf16.msra.mxu0 0
      %269 = vmatprep.subr.bf16.mxu0 0
      %270 = vmatpush2.bf16.msra.mxu0 0
      %271 = vmatprep.subr.bf16.mxu0 0
      %272 = vmatpush2.bf16.msra.mxu0 0
      %273 = vmatprep.mubr.bf16.mxu0 0
      %274 = vmatmul.mubr.bf16.gmra.mxu0 %v221
      %v275 = vpop.f32.mrf.mxu0
      %v276 = vadd.f32 %v177, %v275
      %v277 = vpop.f32.mrf.mxu0
      %v278 = vpop.f32.mrf.mxu0
      %v279 = vadd.f32 %v177, %v278
      %v280 = vpop.f32.mrf.mxu0
      %281 = vmatprep.mubr.bf16.mxu0 0
      %282 = vmatmul.mubr.bf16.gmra.mxu0 %v224
      %v283 = vpop.f32.mrf.mxu0
      %v284 = vadd.f32 %v177, %v283
      %v285 = vpop.f32.mrf.mxu0
      %v286 = vpop.f32.mrf.mxu0
      %v287 = vadd.f32 %v177, %v286
      %v288 = vpop.f32.mrf.mxu0
      %289 = vmatprep.mubr.bf16.mxu0 0
      %290 = vmatmul.mubr.bf16.gmra.mxu0 %v227
      %v291 = vpop.f32.mrf.mxu0
      %v292 = vadd.f32 %v177, %v291
      %v293 = vpop.f32.mrf.mxu0
      %v294 = vpop.f32.mrf.mxu0
      %v295 = vadd.f32 %v177, %v294
      %v296 = vpop.f32.mrf.mxu0
      %297 = vmatprep.mubr.bf16.mxu0 0
      %298 = vmatmul.mubr.bf16.gmra.mxu0 %v230
      %v299 = vpop.f32.mrf.mxu0
      %v300 = vadd.f32 %v177, %v299
      %v301 = vpop.f32.mrf.mxu0
      %v302 = vpop.f32.mrf.mxu0
      %v303 = vadd.f32 %v177, %v302
      %v304 = vpop.f32.mrf.mxu0
      %305 = vmatprep.mubr.bf16.mxu0 0
      %306 = vmatmul.mubr.bf16.gmra.mxu0 %v233
      %v307 = vpop.f32.mrf.mxu0
      %v308 = vadd.f32 %v177, %v307
      %v309 = vpop.f32.mrf.mxu0
      %v310 = vpop.f32.mrf.mxu0
      %v311 = vadd.f32 %v177, %v310
      %v312 = vpop.f32.mrf.mxu0
      %313 = vmatprep.mubr.bf16.mxu0 0
      %314 = vmatmul.mubr.bf16.gmra.mxu0 %v236
      %v315 = vpop.f32.mrf.mxu0
      %v316 = vadd.f32 %v177, %v315
      %v317 = vpop.f32.mrf.mxu0
      %v318 = vpop.f32.mrf.mxu0
      %v319 = vadd.f32 %v177, %v318
      %v320 = vpop.f32.mrf.mxu0
      %321 = vmatprep.mubr.bf16.mxu0 0
      %322 = vmatmul.mubr.bf16.gmra.mxu0 %v239
      %v323 = vpop.f32.mrf.mxu0
      %v324 = vadd.f32 %v177, %v323
      %v325 = vpop.f32.mrf.mxu0
      %v326 = vpop.f32.mrf.mxu0
      %v327 = vadd.f32 %v177, %v326
      %v328 = vpop.f32.mrf.mxu0
      %329 = vdwg.mxu0
      %v330 = vmax.f32 %v276, 0.0
      %v331 = vmax.f32 %v279, 0.0
      %v332 = vmax.f32 %v284, 0.0
      %v333 = vmax.f32 %v287, 0.0
      %v334 = vmax.f32 %v292, 0.0
      %v335 = vmax.f32 %v295, 0.0
      %v336 = vmax.f32 %v300, 0.0
      %v337 = vmax.f32 %v303, 0.0
      %v338 = vmax.f32 %v308, 0.0
      %v339 = vmax.f32 %v311, 0.0
      %v340 = vmax.f32 %v316, 0.0
      %v341 = vmax.f32 %v319, 0.0
      %v342 = vmax.f32 %v324, 0.0
      %v343 = vmax.f32 %v327, 0.0
      %v344 = vpack.c.bf16 %v331, %v330
      %v345 = vpack.c.bf16 %v333, %v332
      %v346 = vpack.c.bf16 %v335, %v334
      %v347 = vpack.c.bf16 %v337, %v336
      %v348 = vpack.c.bf16 %v339, %v338
      %v349 = vpack.c.bf16 %v341, %v340
      %v350 = vpack.c.bf16 %v343, %v342
      %v351 = vlaneseq
      %v352 = vshrl.u32 %v351, 7
      %v353 = vsub.s32 1, %v352
      %v354 = vrot.slane %v159, %v353
      %v359 = vunpack.c.l.b16 %v150
      %v360 = vunpack.c.l.b16 %v151
      %v361 = vunpack.c.l.b16 %v152
      %v362 = vunpack.c.l.b16 %v153
      %v363 = vpack.c.b16 %v360, %v359
      %v364 = vpack.c.b16 %v362, %v361
      %vm367 = vcmask 261120
      %v369 = vsel %vm367, %v344, 0
      %v372 = vsel %vm367, %v345, 0
      %v375 = vsel %vm367, %v346, 0
      %v378 = vsel %vm367, %v347, 0
      %v381 = vsel %vm367, %v348, 0
      %v384 = vsel %vm367, %v349, 0
      %v387 = vsel %vm367, %v350, 0
      %389 = vmatprep.subr.bf16.mxu0 0
      %390 = vmatpush1.bf16.msra.mxu0 0
      %391 = vmatprep.subr.bf16.mxu0 0
      %392 = vmatpush1.bf16.msra.mxu0 0
      %393 = vmatprep.subr.bf16.mxu0 0
      %394 = vmatpush1.bf16.msra.mxu0 0
      %395 = vmatprep.subr.bf16.mxu0 0
      %396 = vmatpush1.bf16.msra.mxu0 0
      %397 = vmatprep.subr.bf16.mxu0 0
      %398 = vmatpush1.bf16.msra.mxu0 0
      %399 = vmatprep.subr.bf16.mxu0 0
      %400 = vmatpush1.bf16.msra.mxu0 0
      %401 = vmatprep.subr.bf16.mxu0 0
      %402 = vmatpush1.bf16.msra.mxu0 %v364
      %403 = vmatprep.subr.bf16.mxu0 0
      %404 = vmatpush1.bf16.msra.mxu0 %v363
      %405 = vmatprep.subr.bf16.mxu0 0
      %406 = vmatpush2.bf16.msra.mxu0 0
      %407 = vmatprep.subr.bf16.mxu0 0
      %408 = vmatpush2.bf16.msra.mxu0 0
      %409 = vmatprep.subr.bf16.mxu0 0
      %410 = vmatpush2.bf16.msra.mxu0 0
      %411 = vmatprep.subr.bf16.mxu0 0
      %412 = vmatpush2.bf16.msra.mxu0 0
      %413 = vmatprep.subr.bf16.mxu0 0
      %414 = vmatpush2.bf16.msra.mxu0 0
      %415 = vmatprep.subr.bf16.mxu0 0
      %416 = vmatpush2.bf16.msra.mxu0 0
      %417 = vmatprep.subr.bf16.mxu0 0
      %418 = vmatpush2.bf16.msra.mxu0 0
      %419 = vmatprep.subr.bf16.mxu0 0
      %420 = vmatpush2.bf16.msra.mxu0 0
      %421 = vmatprep.mubr.bf16.mxu0 0
      %422 = vmatmul.mubr.bf16.gmra.mxu0 %v369
      %v423 = vpop.f32.mrf.mxu0
      %v424 = vadd.f32 %v354, %v423
      %v425 = vpop.f32.mrf.mxu0
      %v426 = vpop.f32.mrf.mxu0
      %v427 = vadd.f32 %v354, %v426
      %v428 = vpop.f32.mrf.mxu0
      %429 = vmatprep.mubr.bf16.mxu0 0
      %430 = vmatmul.mubr.bf16.gmra.mxu0 %v372
      %v431 = vpop.f32.mrf.mxu0
      %v432 = vadd.f32 %v354, %v431
      %v433 = vpop.f32.mrf.mxu0
      %v434 = vpop.f32.mrf.mxu0
      %v435 = vadd.f32 %v354, %v434
      %v436 = vpop.f32.mrf.mxu0
      %437 = vmatprep.mubr.bf16.mxu0 0
      %438 = vmatmul.mubr.bf16.gmra.mxu0 %v375
      %v439 = vpop.f32.mrf.mxu0
      %v440 = vadd.f32 %v354, %v439
      %v441 = vpop.f32.mrf.mxu0
      %v442 = vpop.f32.mrf.mxu0
      %v443 = vadd.f32 %v354, %v442
      %v444 = vpop.f32.mrf.mxu0
      %445 = vmatprep.mubr.bf16.mxu0 0
      %446 = vmatmul.mubr.bf16.gmra.mxu0 %v378
      %v447 = vpop.f32.mrf.mxu0
      %v448 = vadd.f32 %v354, %v447
      %v449 = vpop.f32.mrf.mxu0
      %v450 = vpop.f32.mrf.mxu0
      %v451 = vadd.f32 %v354, %v450
      %v452 = vpop.f32.mrf.mxu0
      %453 = vmatprep.mubr.bf16.mxu0 0
      %454 = vmatmul.mubr.bf16.gmra.mxu0 %v381
      %v455 = vpop.f32.mrf.mxu0
      %v456 = vadd.f32 %v354, %v455
      %v457 = vpop.f32.mrf.mxu0
      %v458 = vpop.f32.mrf.mxu0
      %v459 = vadd.f32 %v354, %v458
      %v460 = vpop.f32.mrf.mxu0
      %461 = vmatprep.mubr.bf16.mxu0 0
      %462 = vmatmul.mubr.bf16.gmra.mxu0 %v384
      %v463 = vpop.f32.mrf.mxu0
      %v464 = vadd.f32 %v354, %v463
      %v465 = vpop.f32.mrf.mxu0
      %v466 = vpop.f32.mrf.mxu0
      %v467 = vadd.f32 %v354, %v466
      %v468 = vpop.f32.mrf.mxu0
      %469 = vmatprep.mubr.bf16.mxu0 0
      %470 = vmatmul.mubr.bf16.gmra.mxu0 %v387
      %v471 = vpop.f32.mrf.mxu0
      %v472 = vadd.f32 %v354, %v471
      %v473 = vpop.f32.mrf.mxu0
      %v474 = vpop.f32.mrf.mxu0
      %v475 = vadd.f32 %v354, %v474
      %v476 = vpop.f32.mrf.mxu0
      %477 = vdwg.mxu0
      %v478 = vmax.f32 %v424, 0.0
      %v479 = vmax.f32 %v427, 0.0
      %v480 = vmax.f32 %v432, 0.0
      %v481 = vmax.f32 %v435, 0.0
      %v482 = vmax.f32 %v440, 0.0
      %v483 = vmax.f32 %v443, 0.0
      %v484 = vmax.f32 %v448, 0.0
      %v485 = vmax.f32 %v451, 0.0
      %v486 = vmax.f32 %v456, 0.0
      %v487 = vmax.f32 %v459, 0.0
      %v488 = vmax.f32 %v464, 0.0
      %v489 = vmax.f32 %v467, 0.0
      %v490 = vmax.f32 %v472, 0.0
      %v491 = vmax.f32 %v475, 0.0
      %v492 = vpack.c.bf16 %v479, %v478
      %v493 = vpack.c.bf16 %v481, %v480
      %v494 = vpack.c.bf16 %v483, %v482
      %v495 = vpack.c.bf16 %v485, %v484
      %v496 = vpack.c.bf16 %v487, %v486
      %v497 = vpack.c.bf16 %v489, %v488
      %v498 = vpack.c.bf16 %v491, %v490
      %v499 = vlaneseq
      %v500 = vshrl.u32 %v499, 7
      %v501 = vsub.s32 2, %v500
      %v502 = vrot.slane %v159, %v501
      %v507 = vunpack.c.l.b16 %v154
      %v508 = vunpack.c.l.b16 %v155
      %v509 = vunpack.c.l.b16 %v156
      %v510 = vunpack.c.l.b16 %v157
      %v511 = vpack.c.b16 %v508, %v507
      %v512 = vpack.c.b16 %v510, %v509
      %v516 = vsel %vm367, %v492, 0
      %v519 = vsel %vm367, %v493, 0
      %v522 = vsel %vm367, %v494, 0
      %v525 = vsel %vm367, %v495, 0
      %v528 = vsel %vm367, %v496, 0
      %v531 = vsel %vm367, %v497, 0
      %v534 = vsel %vm367, %v498, 0
      %536 = vmatprep.subr.bf16.mxu0 0
      %537 = vmatpush1.bf16.msra.mxu0 0
      %538 = vmatprep.subr.bf16.mxu0 0
      %539 = vmatpush1.bf16.msra.mxu0 0
      %540 = vmatprep.subr.bf16.mxu0 0
      %541 = vmatpush1.bf16.msra.mxu0 0
      %542 = vmatprep.subr.bf16.mxu0 0
      %543 = vmatpush1.bf16.msra.mxu0 0
      %544 = vmatprep.subr.bf16.mxu0 0
      %545 = vmatpush1.bf16.msra.mxu0 0
      %546 = vmatprep.subr.bf16.mxu0 0
      %547 = vmatpush1.bf16.msra.mxu0 0
      %548 = vmatprep.subr.bf16.mxu0 0
      %549 = vmatpush1.bf16.msra.mxu0 %v512
      %550 = vmatprep.subr.bf16.mxu0 0
      %551 = vmatpush1.bf16.msra.mxu0 %v511
      %552 = vmatprep.subr.bf16.mxu0 0
      %553 = vmatpush2.bf16.msra.mxu0 0
      %554 = vmatprep.subr.bf16.mxu0 0
      %555 = vmatpush2.bf16.msra.mxu0 0
      %556 = vmatprep.subr.bf16.mxu0 0
      %557 = vmatpush2.bf16.msra.mxu0 0
      %558 = vmatprep.subr.bf16.mxu0 0
      %559 = vmatpush2.bf16.msra.mxu0 0
      %560 = vmatprep.subr.bf16.mxu0 0
      %561 = vmatpush2.bf16.msra.mxu0 0
      %562 = vmatprep.subr.bf16.mxu0 0
      %563 = vmatpush2.bf16.msra.mxu0 0
      %564 = vmatprep.subr.bf16.mxu0 0
      %565 = vmatpush2.bf16.msra.mxu0 0
      %566 = vmatprep.subr.bf16.mxu0 0
      %567 = vmatpush2.bf16.msra.mxu0 0
      %568 = vmatprep.mubr.bf16.mxu0 0
      %569 = vmatmul.mubr.bf16.gmra.mxu0 %v516
      %v570 = vpop.f32.mrf.mxu0
      %v571 = vadd.f32 %v502, %v570
      %v572 = vpop.f32.mrf.mxu0
      %v573 = vpop.f32.mrf.mxu0
      %v574 = vadd.f32 %v502, %v573
      %v575 = vpop.f32.mrf.mxu0
      %576 = vmatprep.mubr.bf16.mxu0 0
      %577 = vmatmul.mubr.bf16.gmra.mxu0 %v519
      %v578 = vpop.f32.mrf.mxu0
      %v579 = vadd.f32 %v502, %v578
      %v580 = vpop.f32.mrf.mxu0
      %v581 = vpop.f32.mrf.mxu0
      %v582 = vadd.f32 %v502, %v581
      %v583 = vpop.f32.mrf.mxu0
      %584 = vmatprep.mubr.bf16.mxu0 0
      %585 = vmatmul.mubr.bf16.gmra.mxu0 %v522
      %v586 = vpop.f32.mrf.mxu0
      %v587 = vadd.f32 %v502, %v586
      %v588 = vpop.f32.mrf.mxu0
      %v589 = vpop.f32.mrf.mxu0
      %v590 = vadd.f32 %v502, %v589
      %v591 = vpop.f32.mrf.mxu0
      %592 = vmatprep.mubr.bf16.mxu0 0
      %593 = vmatmul.mubr.bf16.gmra.mxu0 %v525
      %v594 = vpop.f32.mrf.mxu0
      %v595 = vadd.f32 %v502, %v594
      %v596 = vpop.f32.mrf.mxu0
      %v597 = vpop.f32.mrf.mxu0
      %v598 = vadd.f32 %v502, %v597
      %v599 = vpop.f32.mrf.mxu0
      %600 = vmatprep.mubr.bf16.mxu0 0
      %601 = vmatmul.mubr.bf16.gmra.mxu0 %v528
      %v602 = vpop.f32.mrf.mxu0
      %v603 = vadd.f32 %v502, %v602
      %v604 = vpop.f32.mrf.mxu0
      %v605 = vpop.f32.mrf.mxu0
      %v606 = vadd.f32 %v502, %v605
      %v607 = vpop.f32.mrf.mxu0
      %608 = vmatprep.mubr.bf16.mxu0 0
      %609 = vmatmul.mubr.bf16.gmra.mxu0 %v531
      %v610 = vpop.f32.mrf.mxu0
      %v611 = vadd.f32 %v502, %v610
      %v612 = vpop.f32.mrf.mxu0
      %v613 = vpop.f32.mrf.mxu0
      %v614 = vadd.f32 %v502, %v613
      %v615 = vpop.f32.mrf.mxu0
      %616 = vmatprep.mubr.bf16.mxu0 0
      %617 = vmatmul.mubr.bf16.gmra.mxu0 %v534
      %v618 = vpop.f32.mrf.mxu0
      %v619 = vadd.f32 %v502, %v618
      %v620 = vpop.f32.mrf.mxu0
      %v621 = vpop.f32.mrf.mxu0
      %v622 = vadd.f32 %v502, %v621
      %v623 = vpop.f32.mrf.mxu0
      %624 = vdwg.mxu0
      %625 = vst [vmem:[%s145] sm:$0xff] %v571
      %626 = vst [vmem:[%s145 + $0x8] sm:$0xff] %v574
      %627 = vst [vmem:[%s145 + $0x10] sm:$0xff] %v579
      %628 = vst [vmem:[%s145 + $0x18] sm:$0xff] %v582
      %629 = vst [vmem:[%s145 + $0x20] sm:$0xff] %v587
      %630 = vst [vmem:[%s145 + $0x28] sm:$0xff] %v590
      %631 = vst [vmem:[%s145 + $0x30] sm:$0xff] %v595
      %632 = vst [vmem:[%s145 + $0x38] sm:$0xff] %v598
      %633 = vst [vmem:[%s145 + $0x40] sm:$0xff] %v603
      %634 = vst [vmem:[%s145 + $0x48] sm:$0xff] %v606
      %635 = vst [vmem:[%s145 + $0x50] sm:$0xff] %v611
      %636 = vst [vmem:[%s145 + $0x58] sm:$0xff] %v614
      %637 = vst [vmem:[%s145 + $0x60] sm:$0xff] %v619
      %638 = vst [vmem:[%s145 + $0x68] sm:$0xff] %v622
      %s639 = smul.u32 14, %s13
      %p640 = scmp.lt.s32.totalorder %s639, 27
      %s641 = scalar_select %p640, %s639, 27
      %s642 = smul.addr %s641, 8
      %s643 = scalar_lea.vmem %s2, %s642
      // Predicated region
      $region29: #{linear_qnet_forward.1} parent=27 // pred_check
        %p644 = pneg %p78
      $region30: #{linear_qnet_forward.1} parent=27 // pred_check_branch
        %646 = sbr.rel (%p644) target = $region32
      $region31: #{linear_qnet_forward.1} parent=27 // pred_region
        %s647 = smul.u32 14, %s13
      $region32: #{linear_qnet_forward.1} parent=27 // pred_fallthru
        _
    $region28: #{linear_qnet_forward.1} parent=5 // pred_fallthru
      _
    %p648 = scmp.le.s32.totalorder 2, %s8
    // Predicated region
    $region33: #{linear_qnet_forward.1} parent=5 // pred_check
      %p649 = pneg %p648
    $region34: #{linear_qnet_forward.1} parent=5 // pred_check_branch
      %651 = sbr.rel (%p649) target = $region36
    $region35: #{linear_qnet_forward.1} parent=5 // pred_region
      %s652 = ssub.s32 %s8, 2
      // Predicated region
      $region37: #{linear_qnet_forward.1} parent=35 // pred_check
        %p653 = pneg %p84
      $region38: #{linear_qnet_forward.1} parent=35 // pred_check_branch
        %655 = sbr.rel (%p653) target = $region40
      $region39: #{linear_qnet_forward.1} parent=35 // pred_region
        %s656 = smul.u32 14, %s14
        %p657 = scmp.lt.s32.totalorder %s656, 27
        %s658 = scalar_select %p657, %s656, 27
        %s659 = smul.addr %s658, 8
        %s660 = scalar_lea.vmem %s2, %s659
      $region40: #{linear_qnet_forward.1} parent=35 // pred_fallthru
        _
    $region36: #{linear_qnet_forward.1} parent=5 // pred_fallthru
      _
  $region6: #{linear_qnet_forward.1} parent=0 // loop_footer
    %s12 = sadd.s32 1, %s8
  $region7: #{linear_qnet_forward.1} parent=0 // loop_footer_branch
    %7 = sbr.rel target = $region3
  $region8: #{linear_qnet_forward.1} parent=0 // loop_exit
    _

</llo_original>
